<compile_context>
chip_gen: v7x
topology: tpu7x:2x2x1
jax: 0.10.0
libtpu: 0.0.40
codegen_flags: <defaults>
</compile_context>

<pallas_src>
import functools

import jax
import jax.numpy as jnp
from jax.experimental import pallas as pl
from jax.experimental.pallas import tpu as pltpu


_GRIDLESS_MAX_ROWS = 4096     # gridless path up to a few thousand rows
_DEFAULT_BATCH_BLOCK = 2048   # large blocks amortize ~0.35 us/step grid overhead
# TODO(synk): on v7x (2 TCs, 64 MiB VMEM) pick batch_block ~= ceil(B / (2*k))
# for small k and cap per-block VMEM; on v5e respect the 16 MiB default scoped
# VMEM when raising the gridless ceiling.


def _round_up(x, m):
    return ((x + m - 1) // m) * m


# --------------------------------------------------------------------------
# Kernel
# --------------------------------------------------------------------------
def _critic_fused_kernel(x_ref, slab_ref, out_ref, *, k_in, n1, n2, n_out):
    """Fused twin-Q forward on one batch block.

    x_ref:    [B, k_in]      = [state | action | 1 | 0-pad]
    slab_ref: [3, R, C]      packed, zero-padded, bias-folded layer matrices
    out_ref:  [B, n_out=128] lane-dense; q1 in lane 0, q2 in lane 1
    All slices below are (8,128)-tile aligned -> no masked loads.
    """
    f32 = jnp.float32
    x = x_ref[...]

    # layer 1 (both heads + biases + const-lane injection): one K=k_in dot
    a1 = slab_ref[0]
    h = jnp.maximum(jnp.dot(x, a1[:k_in, :n1], preferred_element_type=f32), 0.0)

    # layer 2 (block-diagonal twin heads, bias folded via const lane)
    a2 = slab_ref[1]
    g = jnp.maximum(jnp.dot(h, a2[:n1, :n2], preferred_element_type=f32), 0.0)

    # layer 3 -> lane-dense [B, 128]; cols 0/1 are q1/q2, rest zero
    a3 = slab_ref[2]
    q = jnp.dot(g, a3[:n2, :n_out], preferred_element_type=f32)
    out_ref[...] = q.astype(out_ref.dtype)


# --------------------------------------------------------------------------
# Wrapper
# --------------------------------------------------------------------------
def critic_forward(state, action, slab, dims, *, batch_block=None):
    """Twin-Q forward. Returns (q1, q2), each [B, 1] float32.

    state:  [B, state_dim]   (f32 or bf16)
    action: [B, action_dim]  (f32 or bf16)
    slab:   [3, R, C] packed fused weights+biases (see pack_critic_params)
    dims:   (state_dim, action_dim, h1, h2)
    batch_block: optional explicit batch tile; if None, gridless up to
      _GRIDLESS_MAX_ROWS rows, else grid with _DEFAULT_BATCH_BLOCK-row blocks.
    """
    sd, ad, h1, h2 = dims
    B = state.shape[0]
    d = sd + ad
    k_in = _round_up(d + 1, 8)
    n1 = _round_up(2 * h1 + 1, 128)
    n2 = _round_up(2 * h2 + 1, 128)
    n_out = 128

    # Augmented input [state | action | 1 | 0-pad]: folds the concat AND the
    # layer-1 bias into a single MXU pass; keeps the caller's dtype (bf16 ok).
    in_dtype = jnp.result_type(state.dtype, action.dtype)
    parts = [state.astype(in_dtype), action.astype(in_dtype),
             jnp.ones((B, 1), in_dtype)]
    if k_in - d - 1 > 0:
        parts.append(jnp.zeros((B, k_in - d - 1), in_dtype))
    x_aug = jnp.concatenate(parts, axis=1)

    kernel = functools.partial(
        _critic_fused_kernel, k_in=k_in, n1=n1, n2=n2, n_out=n_out)
    out_shape = jax.ShapeDtypeStruct((B, n_out), jnp.float32)
    cost = pl.CostEstimate(
        flops=2 * B * (k_in * n1 + n1 * n2 + n2 * n_out),
        transcendentals=0,
        bytes_accessed=(x_aug.size * x_aug.dtype.itemsize
                        + slab.size * slab.dtype.itemsize
                        + B * n_out * 4))

    if batch_block is None:
        gridless = B <= _GRIDLESS_MAX_ROWS
        tb = _DEFAULT_BATCH_BLOCK
    else:
        gridless = B <= batch_block
        tb = batch_block
    tb = max(8, (tb // 8) * 8)

    if gridless:
        # Whole problem resident in VMEM: 2 input DMAs, 1 lane-dense output DMA.
        vmem = pl.BlockSpec(memory_space=pltpu.MemorySpace.VMEM)
        q = pl.pallas_call(
            kernel,
            out_shape=out_shape,
            in_specs=[vmem, vmem],
            out_specs=vmem,
            cost_estimate=cost,
        )(x_aug, slab)
    else:
        q = pl.pallas_call(
            kernel,
            out_shape=out_shape,
            grid_spec=pltpu.PrefetchScalarGridSpec(
                num_scalar_prefetch=0,
                grid=(pl.cdiv(B, tb),),
                in_specs=[
                    pl.BlockSpec((tb, k_in), lambda i: (i, 0)),
                    pl.BlockSpec(slab.shape, lambda i: (0, 0, 0)),
                ],
                out_specs=pl.BlockSpec((tb, n_out), lambda i: (i, 0)),
            ),
            compiler_params=pltpu.CompilerParams(
                dimension_semantics=("parallel",)),
            cost_estimate=cost,
        )(x_aug, slab)

    return q[:, 0:1], q[:, 1:2]


# --------------------------------------------------------------------------
# Parameter init / packing
# --------------------------------------------------------------------------
def init_critic_params(key, state_dim, action_dim, hid_sizes=(32, 32)):
    """PyTorch-style init U(-1/sqrt(fan_in), 1/sqrt(fan_in)).

    Weights stored transposed ([in, out]); biases stored as [1, out]."""
    d_in = state_dim + action_dim
    h1, h2 = hid_sizes
    dims = {
        "1_1": (d_in, h1), "2_1": (h1, h2), "3_1": (h2, 1),
        "1_2": (d_in, h1), "2_2": (h1, h2), "3_2": (h2, 1),
    }
    params = {}
    for name, (fan_in, fan_out) in dims.items():
        key, kw, kb = jax.random.split(key, 3)
        bound = 1.0 / jnp.sqrt(jnp.float32(fan_in))
        params[f"w{name}"] = jax.random.uniform(
            kw, (fan_in, fan_out), jnp.float32, -bound, bound)
        params[f"b{name}"] = jax.random.uniform(
            kb, (1, fan_out), jnp.float32, -bound, bound)
    return params


def pack_critic_params(params, state_dim, action_dim, h1, h2):
    """Fuse twin-head weights + biases into one tile-aligned [3, R, C] slab.

    Layout (all zero-padded, all slices the kernel takes are (8,128) aligned):
      A1[:d, :2h1]      = [W1_state; W1_action]   (both heads, concatenated)
      A1[d,  :2h1]      = b1 ;  A1[d, 2h1] = 1    (constant-1 lane injection)
      A2[:2h1, :2h2]    = blockdiag(W2_1, W2_2)
      A2[2h1, :2h2]     = b2 ;  A2[2h1, 2h2] = 1  (propagate constant lane)
      A3[:2h2, 0:2]     = [w3_1 | w3_2] (per-head columns)
      A3[2h2, 0:2]      = b3
    Output columns padded to 128 -> lane-dense final store.  Pack ONCE.
    """
    # TODO(synk): for large-batch training, store the slab in bfloat16 (keep
    # preferred_element_type=f32 in the kernel) to halve weight DMA bytes.
    d = state_dim + action_dim
    k_in = _round_up(d + 1, 8)
    n1 = _round_up(2 * h1 + 1, 128)
    n2 = _round_up(2 * h2 + 1, 128)
    n_out = 128
    R = max(k_in, n1, n2)
    C = max(n1, n2, n_out)
    f32 = jnp.float32

    # ---- A1 ----
    w1 = jnp.concatenate([params["w1_1"], params["w1_2"]], axis=1)   # [d, 2h1]
    b1 = jnp.concatenate([params["b1_1"], params["b1_2"]], axis=1)   # [1, 2h1]
    a1 = jnp.zeros((R, C), f32)
    a1 = a1.at[:d, :2 * h1].set(w1)
    a1 = a1.at[d, :2 * h1].set(b1[0])
    a1 = a1.at[d, 2 * h1].set(1.0)            # constant-1 lane

    # ---- A2 ----
    b2 = jnp.concatenate([params["b2_1"], params["b2_2"]], axis=1)   # [1, 2h2]
    a2 = jnp.zeros((R, C), f32)
    a2 = a2.at[:h1, :h2].set(params["w2_1"])
    a2 = a2.at[h1:2 * h1, h2:2 * h2].set(params["w2_2"])
    a2 = a2.at[2 * h1, :2 * h2].set(b2[0])
    a2 = a2.at[2 * h1, 2 * h2].set(1.0)       # propagate constant-1 lane

    # ---- A3 ----
    b3 = jnp.concatenate([params["b3_1"], params["b3_2"]], axis=1)   # [1, 2]
    a3 = jnp.zeros((R, C), f32)
    a3 = a3.at[:h2, 0].set(params["w3_1"][:, 0])
    a3 = a3.at[h2:2 * h2, 1].set(params["w3_2"][:, 0])
    a3 = a3.at[2 * h2, :2].set(b3[0])

    return jnp.stack([a1, a2, a3], axis=0)


# --------------------------------------------------------------------------
# Plain-JAX reference (unfused, per-head) for sanity checking
# --------------------------------------------------------------------------
def _reference_forward(state, action, params):
    x = jnp.concatenate([state, action], axis=1)

    def head(suffix):
        h = jnp.maximum(x @ params[f"w1_{suffix}"] + params[f"b1_{suffix}"], 0.0)
        h = jnp.maximum(h @ params[f"w2_{suffix}"] + params[f"b2_{suffix}"], 0.0)
        return h @ params[f"w3_{suffix}"] + params[f"b3_{suffix}"]

    return head("1"), head("2")


# --------------------------------------------------------------------------
# Demo / self-test
# --------------------------------------------------------------------------
if __name__ == "__main__":
    STATE_DIM, ACTION_DIM = 8, 4
    HID = (32, 32)

    key = jax.random.PRNGKey(0)
    key, kp = jax.random.split(key)
    params = init_critic_params(kp, STATE_DIM, ACTION_DIM, HID)
    slab = pack_critic_params(params, STATE_DIM, ACTION_DIM, *HID)
    dims = (STATE_DIM, ACTION_DIM, *HID)

    # ---- small batch: gridless, everything resident in VMEM ----
    key, ks, ka = jax.random.split(key, 3)
    state = jax.random.normal(ks, (2, STATE_DIM), jnp.float32)
    action = jax.random.normal(ka, (2, ACTION_DIM), jnp.float32)

    q1, q2 = critic_forward(state, action, slab, dims)
    jax.block_until_ready((q1, q2))

    r1, r2 = _reference_forward(state, action, params)
    assert q1.shape == (2, 1) and q2.shape == (2, 1)
    assert jnp.allclose(q1, r1, atol=1e-4, rtol=1e-4)
    assert jnp.allclose(q2, r2, atol=1e-4, rtol=1e-4)

    # ---- batch-tiled grid path, NON-divisible B (last block partial) ----
    key, ks, ka = jax.random.split(key, 3)
    state_b = jax.random.normal(ks, (384, STATE_DIM), jnp.float32)
    action_b = jax.random.normal(ka, (384, ACTION_DIM), jnp.float32)

    q1b, q2b = critic_forward(state_b, action_b, slab, dims, batch_block=256)
    jax.block_until_ready((q1b, q2b))

    r1b, r2b = _reference_forward(state_b, action_b, params)
    assert q1b.shape == (384, 1) and q2b.shape == (384, 1)
    assert jnp.allclose(q1b, r1b, atol=1e-4, rtol=1e-4)
    assert jnp.allclose(q2b, r2b, atol=1e-4, rtol=1e-4)

    print("KERNEL_OK")
</pallas_src>

<mosaic_0001>
module attributes {stable_mosaic.version = 11 : i64} {
  func.func @_critic_fused_kernel(%arg0: memref<2x16xf32, #tpu.memory_space<vmem>>, %arg1: memref<3x128x128xf32, #tpu.memory_space<vmem>>, %arg2: memref<2x128xf32, #tpu.memory_space<vmem>>) attributes {dimension_semantics = [], scalar_prefetch = 0 : i64, scratch_operands = 0 : i64, tpu.core_type = #tpu.core_type<tc>} {
    %c0 = arith.constant 0 : index
    %c0_0 = arith.constant 0 : index
    %0 = vector.load %arg0[%c0, %c0_0] : memref<2x16xf32, #tpu.memory_space<vmem>>, vector<2x16xf32>
    %c0_1 = arith.constant 0 : index
    %c0_2 = arith.constant 0 : index
    %c0_3 = arith.constant 0 : index
    %1 = vector.load %arg1[%c0_1, %c0_2, %c0_3] : memref<3x128x128xf32, #tpu.memory_space<vmem>>, vector<1x128x128xf32>
    %2 = vector.shape_cast %1 : vector<1x128x128xf32> to vector<128x128xf32>
    %3 = vector.extract_strided_slice %2 {offsets = [0, 0], sizes = [16, 128], strides = [1, 1]} : vector<128x128xf32> to vector<16x128xf32>
    %cst = arith.constant dense<0.000000e+00> : vector<2x128xf32>
    %4 = tpu.matmul %0, %3, %cst {dimension_numbers = #tpu.dot_dimension_numbers<[1], [0], [0], [1], [0, 0, 1, 1], [], []>} : vector<2x16xf32>, vector<16x128xf32>, vector<2x128xf32> -> vector<2x128xf32>
    %cst_4 = arith.constant 0.000000e+00 : f32
    %5 = vector.broadcast %cst_4 : f32 to vector<2x128xf32>
    %6 = arith.maximumf %4, %5 : vector<2x128xf32>
    %c1 = arith.constant 1 : index
    %c0_5 = arith.constant 0 : index
    %c0_6 = arith.constant 0 : index
    %7 = vector.load %arg1[%c1, %c0_5, %c0_6] : memref<3x128x128xf32, #tpu.memory_space<vmem>>, vector<1x128x128xf32>
    %8 = vector.shape_cast %7 : vector<1x128x128xf32> to vector<128x128xf32>
    %cst_7 = arith.constant dense<0.000000e+00> : vector<2x128xf32>
    %9 = tpu.matmul %6, %8, %cst_7 {dimension_numbers = #tpu.dot_dimension_numbers<[1], [0], [0], [1], [0, 0, 1, 1], [], []>} : vector<2x128xf32>, vector<128x128xf32>, vector<2x128xf32> -> vector<2x128xf32>
    %cst_8 = arith.constant 0.000000e+00 : f32
    %10 = vector.broadcast %cst_8 : f32 to vector<2x128xf32>
    %11 = arith.maximumf %9, %10 : vector<2x128xf32>
    %c2 = arith.constant 2 : index
    %c0_9 = arith.constant 0 : index
    %c0_10 = arith.constant 0 : index
    %12 = vector.load %arg1[%c2, %c0_9, %c0_10] : memref<3x128x128xf32, #tpu.memory_space<vmem>>, vector<1x128x128xf32>
    %13 = vector.shape_cast %12 : vector<1x128x128xf32> to vector<128x128xf32>
    %cst_11 = arith.constant dense<0.000000e+00> : vector<2x128xf32>
    %14 = tpu.matmul %11, %13, %cst_11 {dimension_numbers = #tpu.dot_dimension_numbers<[1], [0], [0], [1], [0, 0, 1, 1], [], []>} : vector<2x128xf32>, vector<128x128xf32>, vector<2x128xf32> -> vector<2x128xf32>
    %c0_12 = arith.constant 0 : index
    %c0_13 = arith.constant 0 : index
    %15 = vector.load %arg2[%c0_12, %c0_13] : memref<2x128xf32, #tpu.memory_space<vmem>>, vector<2x128xf32>
    tpu.vector_store %arg2[%c0_12, %c0_13], %14 {strides = array<i32>} : memref<2x128xf32, #tpu.memory_space<vmem>>, vector<2x128xf32>,
    return
  }
}

</mosaic_0001>

<llo_original>
// kernel: tpu_custom_call.1
$region0: #{tpu_custom_call.1}
  #allocation0 [shape = 'u32[]', space=smem, size = 0x4, offset = 0x4, fixed_abs, tag = 'smem constant byte address 0x4 - core index']
  #allocation1 [shape = 'u32[144,128]{1,0:T(1,128)}', space=vmem, size = 0x12000, scoped, tag = 'internal scratch']
  %s0 = inlined_call_operand.hbm [shape: f32[2,16], index: 0, kind: input, shape index: {}]
  %s1 = inlined_call_operand.hbm [shape: f32[3,128,128], index: 1, kind: input, shape index: {}]
  %s2 = inlined_call_operand.hbm [shape: f32[2,128], index: 2, kind: output, shape index: {}]
  %s3 = sld [smem:[#allocation0]]
  $region26: #{tpu_custom_call.1} parent=0
    _
  %s5 = ssub.s32 1, %s3
  %s6 = scalar_select 0, %s5, %s3
  $region1: #{tpu_custom_call.1} parent=0
    #allocation2 [shape = 'u8[1024]{0}', space=vmem, size = 0x400, scoped, tag = 'input window, operand 0, single buffered']
    #allocation3 [shape = 's32[1]{0}', space=sflag, size = 0x4, scoped, tag = 'scoped memory for tpu_custom_call.1']
    #allocation4 [shape = 's32[1]{0}', space=sflag, size = 0x4, scoped, tag = 'scoped memory for tpu_custom_call.1']
    #allocation5 [shape = 'u8[196608]{0}', space=vmem, size = 0x30000, scoped, tag = 'input window, operand 1, single buffered']
    #allocation6 [shape = 's32[1]{0}', space=sflag, size = 0x4, scoped, tag = 'scoped memory for tpu_custom_call.1']
    #allocation7 [shape = 'u8[1024]{0}', space=vmem, size = 0x400, scoped, tag = 'output window, operand 0, single buffered']
    %7 = vsyncpa [#allocation3], 0
    %8 = vsyncpa [#allocation6], 0
    %9 = vsyncpa [#allocation4], 0
    // Predicated region
    $region2: #{tpu_custom_call.1} parent=1 // pred_check
      _
    $region3: #{tpu_custom_call.1} parent=1 // pred_check_branch
      %11 = sbr.rel (0) target = $region5
    $region4: #{tpu_custom_call.1} parent=1 // pred_region
      %s13 = ssub.s32 32, 32
      %14 = vsyncadd [#allocation3], %s13
      %s16 = sshll.u32 [#allocation2], 4
      %s17 = int_to_ptr.vmem [resolvable:$true] %s16
      %19 = dma.hbm_to_vmem [thread:$0]  %s0, 32, %s17, [#allocation3]
    $region5: #{tpu_custom_call.1} parent=1 // pred_fallthru
      _
    // Predicated region
    $region6: #{tpu_custom_call.1} parent=1 // pred_check
      _
    $region7: #{tpu_custom_call.1} parent=1 // pred_check_branch
      %21 = sbr.rel (0) target = $region9
    $region8: #{tpu_custom_call.1} parent=1 // pred_region
      %s23 = ssub.s32 6144, 6144
      %24 = vsyncadd [#allocation6], %s23
      %s25 = sshll.u32 [#allocation5], 4
      %s26 = int_to_ptr.vmem [resolvable:$true] %s25
      %31 = dma.hbm_to_vmem [thread:$0]  %s1, 6144, %s26, [#allocation6], 128, 128, 8
    $region9: #{tpu_custom_call.1} parent=1 // pred_fallthru
      _
    // Predicated region
    $region10: #{tpu_custom_call.1} parent=1 // pred_check
      _
    $region11: #{tpu_custom_call.1} parent=1 // pred_check_branch
      %33 = sbr.rel (0) target = $region13
    $region12: #{tpu_custom_call.1} parent=1 // pred_region
      %34 = dma.done [#allocation3], 32
    $region13: #{tpu_custom_call.1} parent=1 // pred_fallthru
      _
    // Predicated region
    $region14: #{tpu_custom_call.1} parent=1 // pred_check
      _
    $region15: #{tpu_custom_call.1} parent=1 // pred_check_branch
      %36 = sbr.rel (0) target = $region17
    $region16: #{tpu_custom_call.1} parent=1 // pred_region
      %37 = dma.done [#allocation6], 6144
    $region17: #{tpu_custom_call.1} parent=1 // pred_fallthru
      _
    %v38 = vld [vmem:[#allocation2] sm:$0x3]
    %v39 = vld [vmem:[#allocation5] sm:$0xff]
    %v40 = vld [vmem:[#allocation5 + $0x8] sm:$0xff]
    %vm41 = vcmask 130048
    %v43 = vsel %vm41, %v38, 0
    %45 = vmatprep.subr.mxu0 0.0
    %46 = vmatpush1.msra.mxu0 %v39
    %47 = vmatprep.subr.mxu0 0.0
    %48 = vmatpush1.msra.mxu0 %v40
    %49 = vmatprep.subr.mxu0 0.0
    %50 = vmatpush1.msra.mxu0 0.0
    %51 = vmatprep.subr.mxu0 0.0
    %52 = vmatpush1.msra.mxu0 0.0
    %53 = vmatprep.subr.mxu0 0.0
    %54 = vmatpush1.msra.mxu0 0.0
    %55 = vmatprep.subr.mxu0 0.0
    %56 = vmatpush1.msra.mxu0 0.0
    %57 = vmatprep.subr.mxu0 0.0
    %58 = vmatpush1.msra.mxu0 0.0
    %59 = vmatprep.subr.mxu0 0.0
    %60 = vmatpush1.msra.mxu0 0.0
    %61 = vmatprep.subr.mxu0 0.0
    %62 = vmatpush1.msra.mxu0 0.0
    %63 = vmatprep.subr.mxu0 0.0
    %64 = vmatpush1.msra.mxu0 0.0
    %65 = vmatprep.subr.mxu0 0.0
    %66 = vmatpush1.msra.mxu0 0.0
    %67 = vmatprep.subr.mxu0 0.0
    %68 = vmatpush1.msra.mxu0 0.0
    %69 = vmatprep.subr.mxu0 0.0
    %70 = vmatpush1.msra.mxu0 0.0
    %71 = vmatprep.subr.mxu0 0.0
    %72 = vmatpush1.msra.mxu0 0.0
    %73 = vmatprep.subr.mxu0 0.0
    %74 = vmatpush1.msra.mxu0 0.0
    %75 = vmatprep.subr.mxu0 0.0
    %76 = vmatpush1.msra.mxu0 0.0
    %77 = vmatprep.subr.mxu0 0.0
    %78 = vmatpush1.msra.mxu0 0.0
    %79 = vmatprep.subr.mxu0 0.0
    %80 = vmatpush1.msra.mxu0 0.0
    %81 = vmatprep.subr.mxu0 0.0
    %82 = vmatpush1.msra.mxu0 0.0
    %83 = vmatprep.subr.mxu0 0.0
    %84 = vmatpush1.msra.mxu0 0.0
    %85 = vmatprep.subr.mxu0 0.0
    %86 = vmatpush1.msra.mxu0 0.0
    %87 = vmatprep.subr.mxu0 0.0
    %88 = vmatpush1.msra.mxu0 0.0
    %89 = vmatprep.subr.mxu0 0.0
    %90 = vmatpush1.msra.mxu0 0.0
    %91 = vmatprep.subr.mxu0 0.0
    %92 = vmatpush1.msra.mxu0 0.0
    %93 = vmatprep.subr.mxu0 0.0
    %94 = vmatpush1.msra.mxu0 0.0
    %95 = vmatprep.subr.mxu0 0.0
    %96 = vmatpush1.msra.mxu0 0.0
    %97 = vmatprep.subr.mxu0 0.0
    %98 = vmatpush1.msra.mxu0 0.0
    %99 = vmatprep.subr.mxu0 0.0
    %100 = vmatpush1.msra.mxu0 0.0
    %101 = vmatprep.subr.mxu0 0.0
    %102 = vmatpush1.msra.mxu0 0.0
    %103 = vmatprep.subr.mxu0 0.0
    %104 = vmatpush1.msra.mxu0 0.0
    %105 = vmatprep.subr.mxu0 0.0
    %106 = vmatpush1.msra.mxu0 0.0
    %107 = vmatprep.subr.mxu0 0.0
    %108 = vmatpush1.msra.mxu0 0.0
    %109 = vmatprep.mubr.f32.mxu0 0.0
    %110 = vmatmul.mubr.f32.gmra.mrb[0].mxu0 %v43
    %v111 = vpop.f32.mrb[0].mxu0
    %v112 = vadd.f32 0.0, %v111
    %v113 = vpop.f32.mrb[0].mxu0
    %114 = vdwg.mxu0
    %v115 = vmax.f32 %v112, 0.0
    %s116 = scalar_lea.vmem [#allocation5], 128
    %v117 = vld [vmem:[%s116] sm:$0xff]
    %v118 = vld [vmem:[%s116 + $0x8] sm:$0xff]
    %v119 = vld [vmem:[%s116 + $0x10] sm:$0xff]
    %v120 = vld [vmem:[%s116 + $0x18] sm:$0xff]
    %v121 = vld [vmem:[%s116 + $0x20] sm:$0xff]
    %v122 = vld [vmem:[%s116 + $0x28] sm:$0xff]
    %v123 = vld [vmem:[%s116 + $0x30] sm:$0xff]
    %v124 = vld [vmem:[%s116 + $0x38] sm:$0xff]
    %v125 = vld [vmem:[%s116 + $0x40] sm:$0xff]
    %v126 = vld [vmem:[%s116 + $0x48] sm:$0xff]
    %v127 = vld [vmem:[%s116 + $0x50] sm:$0xff]
    %v128 = vld [vmem:[%s116 + $0x58] sm:$0xff]
    %v129 = vld [vmem:[%s116 + $0x60] sm:$0xff]
    %v130 = vld [vmem:[%s116 + $0x68] sm:$0xff]
    %v131 = vld [vmem:[%s116 + $0x70] sm:$0xff]
    %v132 = vld [vmem:[%s116 + $0x78] sm:$0xff]
    %133 = vmatprep.subr.mxu0 0.0
    %134 = vmatpush1.msra.mxu0 %v117
    %135 = vmatprep.subr.mxu0 0.0
    %136 = vmatpush1.msra.mxu0 %v118
    %137 = vmatprep.subr.mxu0 0.0
    %138 = vmatpush1.msra.mxu0 %v119
    %139 = vmatprep.subr.mxu0 0.0
    %140 = vmatpush1.msra.mxu0 %v120
    %141 = vmatprep.subr.mxu0 0.0
    %142 = vmatpush1.msra.mxu0 %v121
    %143 = vmatprep.subr.mxu0 0.0
    %144 = vmatpush1.msra.mxu0 %v122
    %145 = vmatprep.subr.mxu0 0.0
    %146 = vmatpush1.msra.mxu0 %v123
    %147 = vmatprep.subr.mxu0 0.0
    %148 = vmatpush1.msra.mxu0 %v124
    %149 = vmatprep.subr.mxu0 0.0
    %150 = vmatpush1.msra.mxu0 %v125
    %151 = vmatprep.subr.mxu0 0.0
    %152 = vmatpush1.msra.mxu0 %v126
    %153 = vmatprep.subr.mxu0 0.0
    %154 = vmatpush1.msra.mxu0 %v127
    %155 = vmatprep.subr.mxu0 0.0
    %156 = vmatpush1.msra.mxu0 %v128
    %157 = vmatprep.subr.mxu0 0.0
    %158 = vmatpush1.msra.mxu0 %v129
    %159 = vmatprep.subr.mxu0 0.0
    %160 = vmatpush1.msra.mxu0 %v130
    %161 = vmatprep.subr.mxu0 0.0
    %162 = vmatpush1.msra.mxu0 %v131
    %163 = vmatprep.subr.mxu0 0.0
    %164 = vmatpush1.msra.mxu0 %v132
    %165 = vmatprep.subr.mxu0 0.0
    %166 = vmatpush1.msra.mxu0 0.0
    %167 = vmatprep.subr.mxu0 0.0
    %168 = vmatpush1.msra.mxu0 0.0
    %169 = vmatprep.subr.mxu0 0.0
    %170 = vmatpush1.msra.mxu0 0.0
    %171 = vmatprep.subr.mxu0 0.0
    %172 = vmatpush1.msra.mxu0 0.0
    %173 = vmatprep.subr.mxu0 0.0
    %174 = vmatpush1.msra.mxu0 0.0
    %175 = vmatprep.subr.mxu0 0.0
    %176 = vmatpush1.msra.mxu0 0.0
    %177 = vmatprep.subr.mxu0 0.0
    %178 = vmatpush1.msra.mxu0 0.0
    %179 = vmatprep.subr.mxu0 0.0
    %180 = vmatpush1.msra.mxu0 0.0
    %181 = vmatprep.subr.mxu0 0.0
    %182 = vmatpush1.msra.mxu0 0.0
    %183 = vmatprep.subr.mxu0 0.0
    %184 = vmatpush1.msra.mxu0 0.0
    %185 = vmatprep.subr.mxu0 0.0
    %186 = vmatpush1.msra.mxu0 0.0
    %187 = vmatprep.subr.mxu0 0.0
    %188 = vmatpush1.msra.mxu0 0.0
    %189 = vmatprep.subr.mxu0 0.0
    %190 = vmatpush1.msra.mxu0 0.0
    %191 = vmatprep.subr.mxu0 0.0
    %192 = vmatpush1.msra.mxu0 0.0
    %193 = vmatprep.subr.mxu0 0.0
    %194 = vmatpush1.msra.mxu0 0.0
    %195 = vmatprep.subr.mxu0 0.0
    %196 = vmatpush1.msra.mxu0 0.0
    %197 = vmatprep.mubr.f32.mxu0 0.0
    %198 = vmatmul.mubr.f32.gmra.mrb[0].mxu0 %v115
    %v199 = vpop.f32.mrb[0].mxu0
    %v200 = vadd.f32 0.0, %v199
    %v201 = vpop.f32.mrb[0].mxu0
    %202 = vdwg.mxu0
    %v203 = vmax.f32 %v200, 0.0
    %s204 = scalar_lea.vmem [#allocation5], 256
    %v205 = vld [vmem:[%s204] sm:$0xff]
    %v206 = vld [vmem:[%s204 + $0x8] sm:$0xff]
    %v207 = vld [vmem:[%s204 + $0x10] sm:$0xff]
    %v208 = vld [vmem:[%s204 + $0x18] sm:$0xff]
    %v209 = vld [vmem:[%s204 + $0x20] sm:$0xff]
    %v210 = vld [vmem:[%s204 + $0x28] sm:$0xff]
    %v211 = vld [vmem:[%s204 + $0x30] sm:$0xff]
    %v212 = vld [vmem:[%s204 + $0x38] sm:$0xff]
    %v213 = vld [vmem:[%s204 + $0x40] sm:$0xff]
    %v214 = vld [vmem:[%s204 + $0x48] sm:$0xff]
    %v215 = vld [vmem:[%s204 + $0x50] sm:$0xff]
    %v216 = vld [vmem:[%s204 + $0x58] sm:$0xff]
    %v217 = vld [vmem:[%s204 + $0x60] sm:$0xff]
    %v218 = vld [vmem:[%s204 + $0x68] sm:$0xff]
    %v219 = vld [vmem:[%s204 + $0x70] sm:$0xff]
    %v220 = vld [vmem:[%s204 + $0x78] sm:$0xff]
    %221 = vmatprep.subr.mxu0 0.0
    %222 = vmatpush1.msra.mxu0 %v205
    %223 = vmatprep.subr.mxu0 0.0
    %224 = vmatpush1.msra.mxu0 %v206
    %225 = vmatprep.subr.mxu0 0.0
    %226 = vmatpush1.msra.mxu0 %v207
    %227 = vmatprep.subr.mxu0 0.0
    %228 = vmatpush1.msra.mxu0 %v208
    %229 = vmatprep.subr.mxu0 0.0
    %230 = vmatpush1.msra.mxu0 %v209
    %231 = vmatprep.subr.mxu0 0.0
    %232 = vmatpush1.msra.mxu0 %v210
    %233 = vmatprep.subr.mxu0 0.0
    %234 = vmatpush1.msra.mxu0 %v211
    %235 = vmatprep.subr.mxu0 0.0
    %236 = vmatpush1.msra.mxu0 %v212
    %237 = vmatprep.subr.mxu0 0.0
    %238 = vmatpush1.msra.mxu0 %v213
    %239 = vmatprep.subr.mxu0 0.0
    %240 = vmatpush1.msra.mxu0 %v214
    %241 = vmatprep.subr.mxu0 0.0
    %242 = vmatpush1.msra.mxu0 %v215
    %243 = vmatprep.subr.mxu0 0.0
    %244 = vmatpush1.msra.mxu0 %v216
    %245 = vmatprep.subr.mxu0 0.0
    %246 = vmatpush1.msra.mxu0 %v217
    %247 = vmatprep.subr.mxu0 0.0
    %248 = vmatpush1.msra.mxu0 %v218
    %249 = vmatprep.subr.mxu0 0.0
    %250 = vmatpush1.msra.mxu0 %v219
    %251 = vmatprep.subr.mxu0 0.0
    %252 = vmatpush1.msra.mxu0 %v220
    %253 = vmatprep.subr.mxu0 0.0
    %254 = vmatpush1.msra.mxu0 0.0
    %255 = vmatprep.subr.mxu0 0.0
    %256 = vmatpush1.msra.mxu0 0.0
    %257 = vmatprep.subr.mxu0 0.0
    %258 = vmatpush1.msra.mxu0 0.0
    %259 = vmatprep.subr.mxu0 0.0
    %260 = vmatpush1.msra.mxu0 0.0
    %261 = vmatprep.subr.mxu0 0.0
    %262 = vmatpush1.msra.mxu0 0.0
    %263 = vmatprep.subr.mxu0 0.0
    %264 = vmatpush1.msra.mxu0 0.0
    %265 = vmatprep.subr.mxu0 0.0
    %266 = vmatpush1.msra.mxu0 0.0
    %267 = vmatprep.subr.mxu0 0.0
    %268 = vmatpush1.msra.mxu0 0.0
    %269 = vmatprep.subr.mxu0 0.0
    %270 = vmatpush1.msra.mxu0 0.0
    %271 = vmatprep.subr.mxu0 0.0
    %272 = vmatpush1.msra.mxu0 0.0
    %273 = vmatprep.subr.mxu0 0.0
    %274 = vmatpush1.msra.mxu0 0.0
    %275 = vmatprep.subr.mxu0 0.0
    %276 = vmatpush1.msra.mxu0 0.0
    %277 = vmatprep.subr.mxu0 0.0
    %278 = vmatpush1.msra.mxu0 0.0
    %279 = vmatprep.subr.mxu0 0.0
    %280 = vmatpush1.msra.mxu0 0.0
    %281 = vmatprep.subr.mxu0 0.0
    %282 = vmatpush1.msra.mxu0 0.0
    %283 = vmatprep.subr.mxu0 0.0
    %284 = vmatpush1.msra.mxu0 0.0
    %285 = vmatprep.mubr.f32.mxu0 0.0
    %286 = vmatmul.mubr.f32.gmra.mrb[0].mxu0 %v203
    %v287 = vpop.f32.mrb[0].mxu0
    %v288 = vadd.f32 0.0, %v287
    %v289 = vpop.f32.mrb[0].mxu0
    %290 = vdwg.mxu0
    %291 = vst [vmem:[#allocation7] sm:$0x3] %v288
    // Predicated region
    $region18: #{tpu_custom_call.1} parent=1 // pred_check
      _
    $region19: #{tpu_custom_call.1} parent=1 // pred_check_branch
      %293 = sbr.rel (0) target = $region21
    $region20: #{tpu_custom_call.1} parent=1 // pred_region
      %s295 = ssub.s32 32, 32
      %296 = vsyncadd [#allocation4], %s295
      %s298 = sshll.u32 [#allocation7], 4
      %s299 = int_to_ptr.vmem [resolvable:$true] %s298
      %301 = dma.vmem_to_hbm [thread:$0]  %s299, 32, %s2, [#allocation4]
    $region21: #{tpu_custom_call.1} parent=1 // pred_fallthru
      _
    // Predicated region
    $region22: #{tpu_custom_call.1} parent=1 // pred_check
      _
    $region23: #{tpu_custom_call.1} parent=1 // pred_check_branch
      %303 = sbr.rel (0) target = $region25
    $region24: #{tpu_custom_call.1} parent=1 // pred_region
      %304 = dma.done [#allocation4], 32
    $region25: #{tpu_custom_call.1} parent=1 // pred_fallthru
      _
    %305 = vsyncpa [#allocation3], 1
    %306 = vsyncpa [#allocation6], 1
    %307 = vsyncpa [#allocation4], 1

</llo_original>
